<compile_context>
chip_gen: v7x
topology: tpu7x:2x2x1
jax: 0.10.0
libtpu: 0.0.40
codegen_flags: <defaults>
</compile_context>

<pallas_src>
import jax
import jax.numpy as jnp
from jax.experimental import pallas as pl
from jax.experimental.pallas import tpu as pltpu

# ----------------------------- demo shapes ------------------------------------
B = 16     # batch (small demo size)
L = 32     # latent dim
D = 128    # observed dim (lane-aligned)

LOG2PI = 1.8378770664093453  # log(2*pi)
TM_CAP = 512                 # max batch tile (modest DMA/VMEM on every gen)

_PARALLEL = pltpu.CompilerParams(dimension_semantics=("parallel",))


# ----------------------------- tiling helpers ---------------------------------
def _round_up(n, m):
    return ((n + m - 1) // m) * m


def _pick_tm(nb):
    """Largest batch tile (multiple of 8) covering the batch, capped at TM_CAP;
    for batches big enough to split, keep >= 2 grid tiles so both v7x
    TensorCores get work under dimension_semantics=('parallel',)."""
    if nb > TM_CAP:
        return TM_CAP
    tm = _round_up(nb, 8)
    if nb >= 256:
        tm = min(tm, _round_up(pl.cdiv(nb, 2), 128))
    return tm


# ----------------------------- kernels -----------------------------------------
def _decode(z, w_ref, b_ref):
    """Shared fused matmul: returns (mean, logvar) in f32, each (TM, D)."""
    h = jnp.dot(z, w_ref[...], preferred_element_type=jnp.float32)   # (TM, 2D)
    h = h + b_ref[...].astype(jnp.float32)
    return h[:, :D], h[:, D:]


def decode_kernel(z_ref, w_ref, b_ref, mean_ref, std_ref):
    """forward(z) -> (mean, std).  Single fused (L, 2D) matmul."""
    mean, logvar = _decode(z_ref[...], w_ref, b_ref)
    mean_ref[...] = mean.astype(mean_ref.dtype)
    std_ref[...] = jnp.exp(0.5 * logvar).astype(std_ref.dtype)


def fwd_logprob_kernel(x_ref, z_ref, w_ref, b_ref, mean_ref, std_ref, lp_ref):
    """Fused forward + log_prob: one matmul, one exp, emits mean/std/lp."""
    mean, logvar = _decode(z_ref[...], w_ref, b_ref)
    x = x_ref[...].astype(jnp.float32)
    std = jnp.exp(0.5 * logvar)                        # single EUP exp
    inv_var = pl.reciprocal(std * std, approx=True)    # EUP vrcp (~free slot)
    diff = x - mean
    quad = jnp.sum(diff * diff * inv_var + logvar, axis=-1, keepdims=True)
    mean_ref[...] = mean.astype(mean_ref.dtype)
    std_ref[...] = std.astype(std_ref.dtype)
    lp_ref[...] = -0.5 * (jnp.float32(D * LOG2PI) + quad)   # (TM, 1)


def logprob_kernel(x_ref, z_ref, w_ref, b_ref, lp_ref):
    """log_prob-only: same matmul, NO mean/std writeback (3x less HBM out)."""
    mean, logvar = _decode(z_ref[...], w_ref, b_ref)
    x = x_ref[...].astype(jnp.float32)
    inv_var = jnp.exp(-logvar)                         # exact, single exp
    diff = x - mean
    quad = jnp.sum(diff * diff * inv_var + logvar, axis=-1, keepdims=True)
    lp_ref[...] = -0.5 * (jnp.float32(D * LOG2PI) + quad)


# ----------------------------- wrappers -----------------------------------------
def _act_spec(tm, width):
    # batch-tiled activation / output block
    return pl.BlockSpec((tm, width), lambda i: (i, 0))


def _const_spec(shape):
    # weights/bias: same block at every grid step -> stays VMEM-resident
    return pl.BlockSpec(shape, lambda i: (0, 0))


@jax.jit
def decoder_forward(z, w_cat, b_cat):
    nb = z.shape[0]
    tm = _pick_tm(nb)
    mean, std = pl.pallas_call(
        decode_kernel,
        out_shape=(jax.ShapeDtypeStruct((nb, D), z.dtype),
                   jax.ShapeDtypeStruct((nb, D), z.dtype)),
        grid=(pl.cdiv(nb, tm),),
        in_specs=[_act_spec(tm, L),
                  _const_spec((L, 2 * D)),
                  _const_spec((1, 2 * D))],
        out_specs=(_act_spec(tm, D), _act_spec(tm, D)),
        compiler_params=_PARALLEL,
    )(z, w_cat, b_cat)
    return mean, std


@jax.jit
def decoder_forward_and_log_prob(x, z, w_cat, b_cat):
    nb = z.shape[0]
    tm = _pick_tm(nb)
    mean, std, lp = pl.pallas_call(
        fwd_logprob_kernel,
        out_shape=(jax.ShapeDtypeStruct((nb, D), z.dtype),
                   jax.ShapeDtypeStruct((nb, D), z.dtype),
                   jax.ShapeDtypeStruct((nb, 1), jnp.float32)),
        grid=(pl.cdiv(nb, tm),),
        in_specs=[_act_spec(tm, D),                 # x
                  _act_spec(tm, L),                 # z
                  _const_spec((L, 2 * D)),          # fused weight
                  _const_spec((1, 2 * D))],         # fused bias
        out_specs=(_act_spec(tm, D), _act_spec(tm, D), _act_spec(tm, 1)),
        compiler_params=_PARALLEL,
    )(x, z, w_cat, b_cat)
    return mean, std, lp[:, 0]                      # lp: (B,)


@jax.jit
def decoder_log_prob(x, z, w_cat, b_cat):
    nb = z.shape[0]
    tm = _pick_tm(nb)
    lp = pl.pallas_call(
        logprob_kernel,
        out_shape=jax.ShapeDtypeStruct((nb, 1), jnp.float32),
        grid=(pl.cdiv(nb, tm),),
        in_specs=[_act_spec(tm, D),
                  _act_spec(tm, L),
                  _const_spec((L, 2 * D)),
                  _const_spec((1, 2 * D))],
        out_specs=_act_spec(tm, 1),
        compiler_params=_PARALLEL,
    )(x, z, w_cat, b_cat)
    return lp[:, 0]


# ----------------------------- reference (plain JAX) ----------------------------
def ref_forward(z, wm, bm, wv, bv):
    mean = z @ wm + bm
    std = jnp.exp(0.5 * (z @ wv + bv))
    return mean, std


def ref_log_prob(x, z, wm, bm, wv, bv):
    mean = z @ wm + bm
    logvar = z @ wv + bv
    ll = (-0.5 * jnp.log(2.0 * jnp.pi) - 0.5 * logvar
          - 0.5 * (x - mean) ** 2 * jnp.exp(-logvar))
    return jnp.sum(ll, axis=-1)


# ----------------------------- main ---------------------------------------------
if __name__ == "__main__":
    key = jax.random.PRNGKey(0)
    kz, kx, k1, k2, k3, k4 = jax.random.split(key, 6)

    # Deterministic synthetic parameters (decoder "weights").
    wm = jax.random.normal(k1, (L, D), jnp.float32) * 0.05
    bm = jax.random.normal(k2, (1, D), jnp.float32) * 0.01
    wv = jax.random.normal(k3, (L, D), jnp.float32) * 0.05
    bv = jax.random.normal(k4, (1, D), jnp.float32) * 0.01

    # Fused parameters: one (L, 2D) weight, one (1, 2D) bias.
    w_cat = jnp.concatenate([wm, wv], axis=1)
    b_cat = jnp.concatenate([bm, bv], axis=1)

    # Example inputs.
    z = jax.random.normal(kz, (B, L), jnp.float32)
    x = jax.random.normal(kx, (B, D), jnp.float32)

    mean, std = decoder_forward(z, w_cat, b_cat)
    mean_f, std_f, lp = decoder_forward_and_log_prob(x, z, w_cat, b_cat)
    lp_only = decoder_log_prob(x, z, w_cat, b_cat)
    jax.block_until_ready((mean, std, mean_f, std_f, lp, lp_only))

    # Correctness checks against the pure-JAX reference (f32 path).
    mean_r, std_r = ref_forward(z, wm, bm, wv, bv)
    lp_r = ref_log_prob(x, z, wm, bm, wv, bv)
    assert jnp.allclose(mean, mean_r, atol=1e-4, rtol=1e-4)
    assert jnp.allclose(std, std_r, atol=1e-4, rtol=1e-4)
    assert jnp.allclose(mean_f, mean_r, atol=1e-4, rtol=1e-4)
    assert jnp.allclose(std_f, std_r, atol=1e-4, rtol=1e-4)
    # Fused path uses approx vrcp: relaxed absolute tol (|lp| ~ 1.8e2).
    assert jnp.allclose(lp, lp_r, atol=5e-2, rtol=1e-3)
    # log_prob-only path uses the exact exp(-logvar): tight tol.
    assert jnp.allclose(lp_only, lp_r, atol=1e-3, rtol=1e-4)

    # bf16 I/O smoke test: bf16 activations/weights, f32 accumulation/lp math.
    zb = z.astype(jnp.bfloat16)
    xb = x.astype(jnp.bfloat16)
    wb = w_cat.astype(jnp.bfloat16)
    bb = b_cat.astype(jnp.bfloat16)
    mean_b, std_b, lp_b = decoder_forward_and_log_prob(xb, zb, wb, bb)
    jax.block_until_ready((mean_b, std_b, lp_b))
    assert jnp.allclose(mean_b.astype(jnp.float32), mean_r, atol=5e-2, rtol=5e-2)
    assert jnp.allclose(std_b.astype(jnp.float32), std_r, atol=5e-2, rtol=5e-2)
    assert jnp.allclose(lp_b, lp_r, atol=2.0, rtol=2e-2)

    # TODO(synk): the source `Decoder.forward`/`log_prob` are abstract
    # (raise NotImplementedError); semantics above follow the standard
    # normflow diagonal-Gaussian concrete decoder.
    print("KERNEL_OK")
</pallas_src>

<mosaic_0001>
module attributes {stable_mosaic.version = 11 : i64} {
  func.func @decode_kernel(%arg0: i32, %arg1: memref<16x32xf32, #tpu.memory_space<vmem>>, %arg2: memref<32x256xf32, #tpu.memory_space<vmem>>, %arg3: memref<1x256xf32, #tpu.memory_space<vmem>>, %arg4: memref<16x128xf32, #tpu.memory_space<vmem>>, %arg5: memref<16x128xf32, #tpu.memory_space<vmem>>) attributes {dimension_semantics = [#tpu.dimension_semantics<parallel>], iteration_bounds = array<i64: 1>, scalar_prefetch = 0 : i64, scratch_operands = 0 : i64, tpu.core_type = #tpu.core_type<tc>, window_params = [{transform_indices = @transform_0, window_bounds = array<i64: 16, 32>}, {pipeline_mode = #tpu.pipeline_mode<synchronous>, transform_indices = @transform_1, window_bounds = array<i64: 32, 256>}, {pipeline_mode = #tpu.pipeline_mode<synchronous>, transform_indices = @transform_2, window_bounds = array<i64: 1, 256>}, {transform_indices = @transform_3, window_bounds = array<i64: 16, 128>}, {transform_indices = @transform_4, window_bounds = array<i64: 16, 128>}]} {
    %c0 = arith.constant 0 : index
    %c0_0 = arith.constant 0 : index
    %0 = vector.load %arg1[%c0, %c0_0] : memref<16x32xf32, #tpu.memory_space<vmem>>, vector<16x32xf32>
    %c0_1 = arith.constant 0 : index
    %c0_2 = arith.constant 0 : index
    %1 = vector.load %arg2[%c0_1, %c0_2] : memref<32x256xf32, #tpu.memory_space<vmem>>, vector<32x256xf32>
    %cst = arith.constant dense<0.000000e+00> : vector<16x256xf32>
    %2 = tpu.matmul %0, %1, %cst {dimension_numbers = #tpu.dot_dimension_numbers<[1], [0], [0], [1], [0, 0, 1, 1], [], []>} : vector<16x32xf32>, vector<32x256xf32>, vector<16x256xf32> -> vector<16x256xf32>
    %c0_3 = arith.constant 0 : index
    %c0_4 = arith.constant 0 : index
    %3 = vector.load %arg3[%c0_3, %c0_4] : memref<1x256xf32, #tpu.memory_space<vmem>>, vector<1x256xf32>
    %4 = vector.broadcast %3 : vector<1x256xf32> to vector<16x256xf32>
    %5 = arith.addf %2, %4 : vector<16x256xf32>
    %6 = vector.extract_strided_slice %5 {offsets = [0, 0], sizes = [16, 128], strides = [1, 1]} : vector<16x256xf32> to vector<16x128xf32>
    %7 = vector.extract_strided_slice %5 {offsets = [0, 128], sizes = [16, 128], strides = [1, 1]} : vector<16x256xf32> to vector<16x128xf32>
    %c0_5 = arith.constant 0 : index
    %c0_6 = arith.constant 0 : index
    %8 = vector.load %arg4[%c0_5, %c0_6] : memref<16x128xf32, #tpu.memory_space<vmem>>, vector<16x128xf32>
    tpu.vector_store %arg4[%c0_5, %c0_6], %6 {strides = array<i32>} : memref<16x128xf32, #tpu.memory_space<vmem>>, vector<16x128xf32>,
    %cst_7 = arith.constant 5.000000e-01 : f32
    %9 = vector.broadcast %cst_7 : f32 to vector<16x128xf32>
    %10 = arith.mulf %9, %7 : vector<16x128xf32>
    %11 = math.exp %10 : vector<16x128xf32>
    %c0_8 = arith.constant 0 : index
    %c0_9 = arith.constant 0 : index
    %12 = vector.load %arg5[%c0_8, %c0_9] : memref<16x128xf32, #tpu.memory_space<vmem>>, vector<16x128xf32>
    tpu.vector_store %arg5[%c0_8, %c0_9], %11 {strides = array<i32>} : memref<16x128xf32, #tpu.memory_space<vmem>>, vector<16x128xf32>,
    return
  }
  func.func @transform_0(%arg0: i32) -> (i32, i32) {
    %c0_i32 = arith.constant 0 : i32
    %c0_i32_0 = arith.constant 0 : i32
    return %arg0, %c0_i32 : i32, i32
  }
  func.func @transform_1(%arg0: i32) -> (i32, i32) {
    %c0_i32 = arith.constant 0 : i32
    %c0_i32_0 = arith.constant 0 : i32
    %c0_i32_1 = arith.constant 0 : i32
    return %c0_i32, %c0_i32_0 : i32, i32
  }
  func.func @transform_2(%arg0: i32) -> (i32, i32) {
    %c0_i32 = arith.constant 0 : i32
    %c0_i32_0 = arith.constant 0 : i32
    %c0_i32_1 = arith.constant 0 : i32
    return %c0_i32, %c0_i32_0 : i32, i32
  }
  func.func @transform_3(%arg0: i32) -> (i32, i32) {
    %c0_i32 = arith.constant 0 : i32
    %c0_i32_0 = arith.constant 0 : i32
    return %arg0, %c0_i32 : i32, i32
  }
  func.func @transform_4(%arg0: i32) -> (i32, i32) {
    %c0_i32 = arith.constant 0 : i32
    %c0_i32_0 = arith.constant 0 : i32
    return %arg0, %c0_i32 : i32, i32
  }
}

</mosaic_0001>

<llo_original>
// kernel: decoder_forward.1
$region0: #{decoder_forward.1}
  #allocation0 [shape = 'u32[]', space=smem, size = 0x4, offset = 0x4, fixed_abs, tag = 'smem constant byte address 0x4 - core index']
  #allocation1 [shape = 'u32[144,128]{1,0:T(1,128)}', space=vmem, size = 0x12000, scoped, tag = 'internal scratch']
  %s0 = inlined_call_operand.hbm [shape: f32[16,32], index: 0, kind: input, shape index: {}]
  %s1 = inlined_call_operand.hbm [shape: f32[32,256], index: 1, kind: input, shape index: {}]
  %s2 = inlined_call_operand.vmem [shape: f32[1,256], index: 2, kind: input, shape index: {}]
  %s3 = inlined_call_operand.hbm [shape: f32[16,128], index: 3, kind: output, shape index: {0}]
  %s4 = inlined_call_operand.hbm [shape: f32[16,128], index: 4, kind: output, shape index: {1}]
  %5 = xla_tuple %s3, %s4
  %s6 = sld [smem:[#allocation0]]
  $region38: #{decoder_forward.1} parent=0
    _
  %s8 = ssub.s32 1, %s6
  %s9 = scalar_select 0, %s8, %s6
  $region1: #{decoder_forward.1} parent=0
    #allocation2 [shape = 'u8[8192]{0}', space=vmem, size = 0x2000, scoped, tag = 'input window, operand 0, single buffered']
    #allocation3 [shape = 's32[1]{0}', space=sflag, size = 0x4, scoped, tag = 'scoped memory for decoder_forward.1']
    #allocation4 [shape = 's32[1]{0}', space=sflag, size = 0x4, scoped, tag = 'scoped memory for decoder_forward.1']
    #allocation5 [shape = 'u8[32768]{0}', space=vmem, size = 0x8000, scoped, tag = 'input window, operand 1, single buffered']
    #allocation6 [shape = 's32[1]{0}', space=sflag, size = 0x4, scoped, tag = 'scoped memory for decoder_forward.1']
    #allocation7 [shape = 'u8[8192]{0}', space=vmem, size = 0x2000, scoped, tag = 'output window, operand 0, single buffered']
    #allocation8 [shape = 'u8[8192]{0}', space=vmem, size = 0x2000, scoped, tag = 'output window, operand 1, single buffered']
    #allocation9 [shape = 's32[1]{0}', space=sflag, size = 0x4, scoped, tag = 'scoped memory for decoder_forward.1']
    %10 = vsyncpa [#allocation3], 0
    %11 = vsyncpa [#allocation6], 0
    %12 = vsyncpa [#allocation4], 0
    %13 = vsyncpa [#allocation9], 0
    // Predicated region
    $region2: #{decoder_forward.1} parent=1 // pred_check
      _
    $region3: #{decoder_forward.1} parent=1 // pred_check_branch
      %15 = sbr.rel (0) target = $region5
    $region4: #{decoder_forward.1} parent=1 // pred_region
      %s17 = ssub.s32 256, 256
      %18 = vsyncadd [#allocation3], %s17
      %s19 = sshll.u32 [#allocation2], 4
      %s20 = int_to_ptr.vmem [resolvable:$true] %s19
      %25 = dma.hbm_to_vmem [thread:$0]  %s0, 256, %s20, [#allocation3], 128, 128, 8
    $region5: #{decoder_forward.1} parent=1 // pred_fallthru
      _
    // Predicated region
    $region6: #{decoder_forward.1} parent=1 // pred_check
      _
    $region7: #{decoder_forward.1} parent=1 // pred_check_branch
      %27 = sbr.rel (0) target = $region9
    $region8: #{decoder_forward.1} parent=1 // pred_region
      %s29 = ssub.s32 1024, 1024
      %30 = vsyncadd [#allocation6], %s29
      %s31 = sshll.u32 [#allocation5], 4
      %s32 = int_to_ptr.vmem [resolvable:$true] %s31
      %37 = dma.hbm_to_vmem [thread:$0]  %s1, 1024, %s32, [#allocation6], 256, 256, 16
    $region9: #{decoder_forward.1} parent=1 // pred_fallthru
      _
    // Predicated region
    $region10: #{decoder_forward.1} parent=1 // pred_check
      _
    $region11: #{decoder_forward.1} parent=1 // pred_check_branch
      %39 = sbr.rel (0) target = $region13
    $region12: #{decoder_forward.1} parent=1 // pred_region
      _
    $region13: #{decoder_forward.1} parent=1 // pred_fallthru
      _
    // Predicated region
    $region14: #{decoder_forward.1} parent=1 // pred_check
      _
    $region15: #{decoder_forward.1} parent=1 // pred_check_branch
      %41 = sbr.rel (0) target = $region17
    $region16: #{decoder_forward.1} parent=1 // pred_region
      %42 = dma.done [#allocation3], 256
    $region17: #{decoder_forward.1} parent=1 // pred_fallthru
      _
    // Predicated region
    $region18: #{decoder_forward.1} parent=1 // pred_check
      _
    $region19: #{decoder_forward.1} parent=1 // pred_check_branch
      %44 = sbr.rel (0) target = $region21
    $region20: #{decoder_forward.1} parent=1 // pred_region
      %45 = dma.done [#allocation6], 1024
    $region21: #{decoder_forward.1} parent=1 // pred_fallthru
      _
    %v46 = vld [vmem:[#allocation2] sm:$0xff]
    %v47 = vld [vmem:[#allocation2 + $0x8] sm:$0xff]
    %v48 = vld [vmem:[#allocation5] sm:$0xff]
    %v49 = vld [vmem:[#allocation5 + $0x8] sm:$0xff]
    %v50 = vld [vmem:[#allocation5 + $0x10] sm:$0xff]
    %v51 = vld [vmem:[#allocation5 + $0x18] sm:$0xff]
    %v52 = vld [vmem:[#allocation5 + $0x20] sm:$0xff]
    %v53 = vld [vmem:[#allocation5 + $0x28] sm:$0xff]
    %v54 = vld [vmem:[#allocation5 + $0x30] sm:$0xff]
    %v55 = vld [vmem:[#allocation5 + $0x38] sm:$0xff]
    %v56 = vld [vmem:[%s2] sm:$0x3]
    %v58 = vlaneseq
    %v59 = vshrl.u32 %v58, 7
    %v60 = vsub.s32 0, %v59
    %v61 = vrot.slane %v56, %v60
    %v62 = vlaneseq
    %v63 = vshrl.u32 %v62, 7
    %v64 = vsub.s32 1, %v63
    %v65 = vrot.slane %v56, %v64
    %vm68 = vcmask 261120
    %v70 = vsel %vm68, %v46, 0
    %v73 = vsel %vm68, %v47, 0
    %75 = vmatprep.subr.mxu0 %v49
    %76 = vmatpush1.msra.mxu0 %v48
    %77 = vmatprep.subr.mxu0 %v51
    %78 = vmatpush1.msra.mxu0 %v50
    %79 = vmatprep.subr.mxu0 %v53
    %80 = vmatpush1.msra.mxu0 %v52
    %81 = vmatprep.subr.mxu0 %v55
    %82 = vmatpush1.msra.mxu0 %v54
    %83 = vmatprep.subr.mxu0 0.0
    %84 = vmatpush1.msra.mxu0 0.0
    %85 = vmatprep.subr.mxu0 0.0
    %86 = vmatpush1.msra.mxu0 0.0
    %87 = vmatprep.subr.mxu0 0.0
    %88 = vmatpush1.msra.mxu0 0.0
    %89 = vmatprep.subr.mxu0 0.0
    %90 = vmatpush1.msra.mxu0 0.0
    %91 = vmatprep.subr.mxu0 0.0
    %92 = vmatpush1.msra.mxu0 0.0
    %93 = vmatprep.subr.mxu0 0.0
    %94 = vmatpush1.msra.mxu0 0.0
    %95 = vmatprep.subr.mxu0 0.0
    %96 = vmatpush1.msra.mxu0 0.0
    %97 = vmatprep.subr.mxu0 0.0
    %98 = vmatpush1.msra.mxu0 0.0
    %99 = vmatprep.subr.mxu0 0.0
    %100 = vmatpush1.msra.mxu0 0.0
    %101 = vmatprep.subr.mxu0 0.0
    %102 = vmatpush1.msra.mxu0 0.0
    %103 = vmatprep.subr.mxu0 0.0
    %104 = vmatpush1.msra.mxu0 0.0
    %105 = vmatprep.subr.mxu0 0.0
    %106 = vmatpush1.msra.mxu0 0.0
    %107 = vmatprep.subr.mxu0 0.0
    %108 = vmatpush1.msra.mxu0 0.0
    %109 = vmatprep.subr.mxu0 0.0
    %110 = vmatpush1.msra.mxu0 0.0
    %111 = vmatprep.subr.mxu0 0.0
    %112 = vmatpush1.msra.mxu0 0.0
    %113 = vmatprep.subr.mxu0 0.0
    %114 = vmatpush1.msra.mxu0 0.0
    %115 = vmatprep.subr.mxu0 0.0
    %116 = vmatpush1.msra.mxu0 0.0
    %117 = vmatprep.subr.mxu0 0.0
    %118 = vmatpush1.msra.mxu0 0.0
    %119 = vmatprep.subr.mxu0 0.0
    %120 = vmatpush1.msra.mxu0 0.0
    %121 = vmatprep.subr.mxu0 0.0
    %122 = vmatpush1.msra.mxu0 0.0
    %123 = vmatprep.subr.mxu0 0.0
    %124 = vmatpush1.msra.mxu0 0.0
    %125 = vmatprep.subr.mxu0 0.0
    %126 = vmatpush1.msra.mxu0 0.0
    %127 = vmatprep.subr.mxu0 0.0
    %128 = vmatpush1.msra.mxu0 0.0
    %129 = vmatprep.subr.mxu0 0.0
    %130 = vmatpush1.msra.mxu0 0.0
    %131 = vmatprep.subr.mxu0 0.0
    %132 = vmatpush1.msra.mxu0 0.0
    %133 = vmatprep.subr.mxu0 0.0
    %134 = vmatpush1.msra.mxu0 0.0
    %135 = vmatprep.subr.mxu0 0.0
    %136 = vmatpush1.msra.mxu0 0.0
    %137 = vmatprep.subr.mxu0 0.0
    %138 = vmatpush1.msra.mxu0 0.0
    %139 = vmatprep.mubr.f32.mxu0 0.0
    %140 = vmatmul.mubr.f32.gmra.mrb[0].mxu0 %v70
    %v141 = vpop.f32.mrb[0].mxu0
    %v142 = vadd.f32 %v61, %v141
    %v143 = vpop.f32.mrb[0].mxu0
    %v144 = vadd.f32 %v65, %v143
    %145 = vmatprep.mubr.f32.mxu0 0.0
    %146 = vmatmul.mubr.f32.gmra.mrb[0].mxu0 %v73
    %v147 = vpop.f32.mrb[0].mxu0
    %v148 = vadd.f32 %v61, %v147
    %v149 = vpop.f32.mrb[0].mxu0
    %v150 = vadd.f32 %v65, %v149
    %151 = vdwg.mxu0
    %152 = vst [vmem:[#allocation7] sm:$0xff] %v142
    %153 = vst [vmem:[#allocation7 + $0x8] sm:$0xff] %v148
    %v154 = vmul.f32 %v144, 0.5
    %v155 = vmul.f32 %v150, 0.5
    %v156 = vmul.f32 %v154, 1.442695
    %v157 = vpow.pop %v156
    %v158 = vmul.f32 %v155, 1.442695
    %v159 = vpow.pop %v158
    %160 = vst [vmem:[#allocation8] sm:$0xff] %v157
    %161 = vst [vmem:[#allocation8 + $0x8] sm:$0xff] %v159
    // Predicated region
    $region22: #{decoder_forward.1} parent=1 // pred_check
      _
    $region23: #{decoder_forward.1} parent=1 // pred_check_branch
      %163 = sbr.rel (0) target = $region25
    $region24: #{decoder_forward.1} parent=1 // pred_region
      %s165 = ssub.s32 256, 256
      %166 = vsyncadd [#allocation4], %s165
      %s167 = sshll.u32 [#allocation7], 4
      %s168 = int_to_ptr.vmem [resolvable:$true] %s167
      %173 = dma.vmem_to_hbm [thread:$0]  %s168, 256, %s3, [#allocation4], 128, 128, 8
    $region25: #{decoder_forward.1} parent=1 // pred_fallthru
      _
    // Predicated region
    $region26: #{decoder_forward.1} parent=1 // pred_check
      _
    $region27: #{decoder_forward.1} parent=1 // pred_check_branch
      %175 = sbr.rel (0) target = $region29
    $region28: #{decoder_forward.1} parent=1 // pred_region
      %s177 = ssub.s32 256, 256
      %178 = vsyncadd [#allocation9], %s177
      %s179 = sshll.u32 [#allocation8], 4
      %s180 = int_to_ptr.vmem [resolvable:$true] %s179
      %185 = dma.vmem_to_hbm [thread:$0]  %s180, 256, %s4, [#allocation9], 128, 128, 8
    $region29: #{decoder_forward.1} parent=1 // pred_fallthru
      _
    // Predicated region
    $region30: #{decoder_forward.1} parent=1 // pred_check
      _
    $region31: #{decoder_forward.1} parent=1 // pred_check_branch
      %187 = sbr.rel (0) target = $region33
    $region32: #{decoder_forward.1} parent=1 // pred_region
      %188 = dma.done [#allocation4], 256
    $region33: #{decoder_forward.1} parent=1 // pred_fallthru
      _
    // Predicated region
    $region34: #{decoder_forward.1} parent=1 // pred_check
      _
    $region35: #{decoder_forward.1} parent=1 // pred_check_branch
      %190 = sbr.rel (0) target = $region37
    $region36: #{decoder_forward.1} parent=1 // pred_region
      %191 = dma.done [#allocation9], 256
    $region37: #{decoder_forward.1} parent=1 // pred_fallthru
      _
    %192 = vsyncpa [#allocation3], 1
    %193 = vsyncpa [#allocation6], 1
    %194 = vsyncpa [#allocation4], 1
    %195 = vsyncpa [#allocation9], 1

</llo_original>
